<compile_context>
chip_gen: v6e
topology: v6e:2x2x1
jax: 0.10.0
libtpu: 0.0.40
codegen_flags: <defaults>
</compile_context>

<pallas_src>
import jax
import jax.numpy as jnp
from jax.experimental import pallas as pl
from jax.experimental.pallas import tpu as pltpu

# ----------------------- small, self-contained hyper-params -----------------------
NUM_ENT   = 32
NUM_REL   = 4            # StarE doubles relations (fwd + inverse) -> 2*NUM_REL rows
EMB_DIM   = 32
N_LAYER   = 1            # -> gcn_dim == emb_dim and conv2 is None (as in the module)
GCN_DIM   = EMB_DIM
NUM_EDGES = 24
NUM_QUALS = 6
BATCH     = 2

N_LHS = NUM_EDGES + NUM_ENT + 2 * NUM_REL     # 64 rows of the batched-matmul LHS


def _vmem_spec():
    return pl.BlockSpec(memory_space=pltpu.MemorySpace.VMEM)


def _one_hot(idx_col, num_classes):
    """idx_col: (rows, 1) int32 -> (rows, num_classes) f32 one-hot.

    Built with a lane iota + VPU compare; consumed by the MXU as a gather /
    scatter matrix (this is how gathers and the scatter-add live inside the
    fused kernel instead of as XLA ops between pallas_calls)."""
    rows = idx_col.shape[0]
    lane = jax.lax.broadcasted_iota(jnp.int32, (rows, num_classes), 1)
    return jnp.where(idx_col == lane, 1.0, 0.0).astype(jnp.float32)


# ------------------------------ ONE fused Pallas kernel ----------------------------
def _fused_stare_kernel(src_ref, dst_ref, et_ref, ent_ref, rel_ref,
                        x0_ref, r0_ref, wcat_ref, b1_ref, bias_ref,
                        logits_ref, pred_ref, lhs_ref):
    """Entire StareEncoder forward (conv1 + DistMult scoring head) in one kernel.

    Everything (embedding tables, weights, messages, aggregates, logits) stays
    resident in VMEM; the MXU sees 6 back-to-back small matmuls."""
    x0 = x0_ref[...]                                   # (NUM_ENT,   EMB_DIM)
    r0 = r0_ref[...]                                   # (2*NUM_REL, EMB_DIM)

    # --- per-edge gathers as one-hot MXU matmuls -----------------------------------
    oh_src = _one_hot(src_ref[...], NUM_ENT)           # (E, NUM_ENT)
    oh_dst = _one_hot(dst_ref[...], NUM_ENT)           # (E, NUM_ENT)
    oh_et  = _one_hot(et_ref[...], 2 * NUM_REL)        # (E, 2*NUM_REL)
    x_src = jnp.dot(oh_src, x0, preferred_element_type=jnp.float32)   # (E, D)
    r_et  = jnp.dot(oh_et,  r0, preferred_element_type=jnp.float32)   # (E, D)

    # --- batched matmul: [comp; x0; r0] @ [W1 | W_loop | W_rel] in ONE MXU pass ----
    lhs_ref[0:NUM_EDGES, :]                   = x_src - r_et           # 'sub' composition
    lhs_ref[NUM_EDGES:NUM_EDGES + NUM_ENT, :] = x0
    lhs_ref[NUM_EDGES + NUM_ENT:N_LHS, :]     = r0
    big = jnp.dot(lhs_ref[...], wcat_ref[...],
                  preferred_element_type=jnp.float32)                  # (64, 96)
    msg  = big[0:NUM_EDGES, 0:GCN_DIM]                                 # (E,  D)
    loop = big[NUM_EDGES:NUM_EDGES + NUM_ENT, GCN_DIM:2 * GCN_DIM]     # (N,  D)
    r1   = big[NUM_EDGES + NUM_ENT:N_LHS, 2 * GCN_DIM:3 * GCN_DIM]     # (2R, D)

    # --- scatter-add + degree count as transposed one-hot matmuls (MXU) ------------
    trans_a = (((0,), (0,)), ((), ()))
    agg = jax.lax.dot_general(oh_dst, msg, trans_a,
                              preferred_element_type=jnp.float32)      # (N, D)
    ones_e = jnp.ones((NUM_EDGES, 1), jnp.float32)
    deg = jax.lax.dot_general(oh_dst, ones_e, trans_a,
                              preferred_element_type=jnp.float32)      # (N, 1)
    agg = agg / jnp.maximum(deg, 1.0)

    # --- node update (VPU/EUP) ------------------------------------------------------
    x1 = jnp.tanh(agg + loop + b1_ref[...])                            # (N, D)

    # --- scoring head: batch gathers + DistMult interaction + all-entity logits ----
    sub_emb = jnp.dot(_one_hot(ent_ref[...], NUM_ENT), x1,
                      preferred_element_type=jnp.float32)              # (B, D)
    rel_emb = jnp.dot(_one_hot(rel_ref[...], 2 * NUM_REL), r1,
                      preferred_element_type=jnp.float32)              # (B, D)
    pred = sub_emb * rel_emb
    pred_ref[...] = pred
    # logits = pred @ x1^T + bias; x1 is VMEM-resident, the 32x32 transpose is a
    # single in-VMEM relayout feeding the MXU (no HBM round trip).
    logits = jax.lax.dot_general(pred, x1, (((1,), (1,)), ((), ())),
                                 preferred_element_type=jnp.float32)   # (B, NUM_ENT)
    logits_ref[...] = logits + bias_ref[...]


# ------------------------------- parameters / graph -------------------------------
def init_params(key):
    ks = jax.random.split(key, 8)

    def xavier(k, shape):
        fan_in, fan_out = shape[-2], shape[-1]
        std = (2.0 / (fan_in + fan_out)) ** 0.5
        return std * jax.random.normal(k, shape, jnp.float32)

    init_embed = xavier(ks[0], (NUM_ENT, EMB_DIM)).at[0].set(0.0)        # init_embed.data[0] = 0
    init_rel   = xavier(ks[1], (2 * NUM_REL, EMB_DIM)).at[0].set(0.0)    # init_rel.data[0]  = 0
    return {
        "init_embed": init_embed,
        "init_rel":   init_rel,
        "w1":      xavier(ks[2], (EMB_DIM, GCN_DIM)),   # conv1 edge transform
        "w_loop1": xavier(ks[3], (EMB_DIM, GCN_DIM)),   # conv1 self-loop transform
        "w_rel1":  xavier(ks[4], (EMB_DIM, GCN_DIM)),   # conv1 relation transform
        "b1":      jnp.zeros((1, GCN_DIM), jnp.float32),
        "bias":    jnp.zeros((1, NUM_ENT), jnp.float32),  # register_parameter('bias', zeros(num_ent))
    }


def make_graph(key):
    k1, k2, k3 = jax.random.split(key, 3)
    edge_index = jax.random.randint(k1, (2, NUM_EDGES), 0, NUM_ENT, dtype=jnp.int32)
    edge_type  = jax.random.randint(k2, (NUM_EDGES,), 0, 2 * NUM_REL, dtype=jnp.int32)
    quals      = jax.random.randint(k3, (3, NUM_QUALS), 0, NUM_ENT, dtype=jnp.int32)
    return {"edge_index": edge_index, "edge_type": edge_type, "quals": quals}


# ------------------------------------ forward --------------------------------------
@jax.jit
def stare_encoder_forward(params, graph, ent, rel):
    """Mirrors StareEncoder.forward (eval mode: dropouts are identities):
         x, r = conv1(init_embed, edge_index, edge_type, init_rel, quals)
         sub_emb = x[ent]; rel_emb = r[rel]
         pred    = graph_model(sub_emb, rel_emb)
         logits  = graph_model.get_logits(pred, x)
    Entire forward runs inside ONE fused Pallas kernel.
    """
    # TODO(synk): StarEConvLayer source not provided -> simplified relational GCN with
    # 'sub' composition; qualifier (quals) aggregation into edge relations is omitted.
    # TODO(synk): graph_model / get_logits not provided -> DistMult interaction assumed.
    src   = graph["edge_index"][0].reshape(NUM_EDGES, 1).astype(jnp.int32)
    dst   = graph["edge_index"][1].reshape(NUM_EDGES, 1).astype(jnp.int32)
    et    = graph["edge_type"].reshape(NUM_EDGES, 1).astype(jnp.int32)
    ent_c = ent.reshape(BATCH, 1).astype(jnp.int32)
    rel_c = rel.reshape(BATCH, 1).astype(jnp.int32)
    # One tiny concat of the three (D, D) weights along N -> single (D, 3D) MXU RHS.
    wcat = jnp.concatenate([params["w1"], params["w_loop1"], params["w_rel1"]], axis=1)

    args = (src, dst, et, ent_c, rel_c,
            params["init_embed"], params["init_rel"], wcat,
            params["b1"], params["bias"])

    logits, pred = pl.pallas_call(
        _fused_stare_kernel,
        out_shape=(jax.ShapeDtypeStruct((BATCH, NUM_ENT), jnp.float32),
                   jax.ShapeDtypeStruct((BATCH, GCN_DIM), jnp.float32)),
        in_specs=[_vmem_spec() for _ in args],
        out_specs=(_vmem_spec(), _vmem_spec()),
        scratch_shapes=[pltpu.VMEM((N_LHS, EMB_DIM), jnp.float32)],
    )(*args)
    return logits, pred


# --------------------------------- pure-JAX reference -------------------------------
def reference_forward(params, graph, ent, rel):
    x0, r0 = params["init_embed"], params["init_rel"]
    src, dst = graph["edge_index"][0], graph["edge_index"][1]
    et = graph["edge_type"]
    msg = (x0[src] - r0[et]) @ params["w1"]
    agg = jnp.zeros((NUM_ENT, GCN_DIM), jnp.float32).at[dst].add(msg)
    deg = jnp.zeros((NUM_ENT,), jnp.float32).at[dst].add(1.0)
    agg = agg / jnp.maximum(deg, 1.0)[:, None]
    x1 = jnp.tanh(agg + x0 @ params["w_loop1"] + params["b1"])
    r1 = r0 @ params["w_rel1"]
    pred = x1[ent] * r1[rel]
    logits = pred @ x1.T + params["bias"]
    return logits, pred


# --------------------------------------- main ---------------------------------------
if __name__ == "__main__":
    key = jax.random.PRNGKey(0)
    kp, kg, ke, kr = jax.random.split(key, 4)

    params = init_params(kp)
    graph  = make_graph(kg)
    ent = jax.random.randint(ke, (BATCH,), 0, NUM_ENT, dtype=jnp.int32)
    rel = jax.random.randint(kr, (BATCH,), 0, 2 * NUM_REL, dtype=jnp.int32)

    logits, pred = stare_encoder_forward(params, graph, ent, rel)
    jax.block_until_ready((logits, pred))

    logits_ref, pred_ref = reference_forward(params, graph, ent, rel)
    assert logits.shape == (BATCH, NUM_ENT) and pred.shape == (BATCH, GCN_DIM)
    assert jnp.allclose(logits, logits_ref, atol=2e-2, rtol=2e-2)
    assert jnp.allclose(pred, pred_ref, atol=2e-2, rtol=2e-2)

    print("KERNEL_OK")
</pallas_src>

<mosaic_0001>
module attributes {stable_mosaic.version = 11 : i64} {
  func.func @_fused_stare_kernel(%arg0: memref<24x1xi32, #tpu.memory_space<vmem>>, %arg1: memref<24x1xi32, #tpu.memory_space<vmem>>, %arg2: memref<24x1xi32, #tpu.memory_space<vmem>>, %arg3: memref<2x1xi32, #tpu.memory_space<vmem>>, %arg4: memref<2x1xi32, #tpu.memory_space<vmem>>, %arg5: memref<32x32xf32, #tpu.memory_space<vmem>>, %arg6: memref<8x32xf32, #tpu.memory_space<vmem>>, %arg7: memref<32x96xf32, #tpu.memory_space<vmem>>, %arg8: memref<1x32xf32, #tpu.memory_space<vmem>>, %arg9: memref<1x32xf32, #tpu.memory_space<vmem>>, %arg10: memref<2x32xf32, #tpu.memory_space<vmem>>, %arg11: memref<2x32xf32, #tpu.memory_space<vmem>>, %arg12: memref<64x32xf32, #tpu.memory_space<vmem>>) attributes {dimension_semantics = [], scalar_prefetch = 0 : i64, scratch_operands = 1 : i64, tpu.core_type = #tpu.core_type<tc>} {
    %c0 = arith.constant 0 : index
    %c0_0 = arith.constant 0 : index
    %0 = vector.load %arg5[%c0, %c0_0] : memref<32x32xf32, #tpu.memory_space<vmem>>, vector<32x32xf32>
    %c0_1 = arith.constant 0 : index
    %c0_2 = arith.constant 0 : index
    %1 = vector.load %arg6[%c0_1, %c0_2] : memref<8x32xf32, #tpu.memory_space<vmem>>, vector<8x32xf32>
    %c0_3 = arith.constant 0 : index
    %c0_4 = arith.constant 0 : index
    %2 = vector.load %arg0[%c0_3, %c0_4] : memref<24x1xi32, #tpu.memory_space<vmem>>, vector<24x1xi32>
    %3 = tpu.iota {dimensions = array<i32: 1>} : vector<24x32xi32>
    %4 = vector.broadcast %2 : vector<24x1xi32> to vector<24x32xi32>
    %5 = arith.cmpi eq, %4, %3 : vector<24x32xi32>
    %cst = arith.constant 1.000000e+00 : f32
    %cst_5 = arith.constant 0.000000e+00 : f32
    %6 = vector.broadcast %cst : f32 to vector<24x32xf32>
    %7 = vector.broadcast %cst_5 : f32 to vector<24x32xf32>
    %8 = arith.select %5, %6, %7 : vector<24x32xi1>, vector<24x32xf32>
    %c0_6 = arith.constant 0 : index
    %c0_7 = arith.constant 0 : index
    %9 = vector.load %arg1[%c0_6, %c0_7] : memref<24x1xi32, #tpu.memory_space<vmem>>, vector<24x1xi32>
    %10 = tpu.iota {dimensions = array<i32: 1>} : vector<24x32xi32>
    %11 = vector.broadcast %9 : vector<24x1xi32> to vector<24x32xi32>
    %12 = arith.cmpi eq, %11, %10 : vector<24x32xi32>
    %cst_8 = arith.constant 1.000000e+00 : f32
    %cst_9 = arith.constant 0.000000e+00 : f32
    %13 = vector.broadcast %cst_8 : f32 to vector<24x32xf32>
    %14 = vector.broadcast %cst_9 : f32 to vector<24x32xf32>
    %15 = arith.select %12, %13, %14 : vector<24x32xi1>, vector<24x32xf32>
    %c0_10 = arith.constant 0 : index
    %c0_11 = arith.constant 0 : index
    %16 = vector.load %arg2[%c0_10, %c0_11] : memref<24x1xi32, #tpu.memory_space<vmem>>, vector<24x1xi32>
    %17 = tpu.iota {dimensions = array<i32: 1>} : vector<24x8xi32>
    %18 = vector.broadcast %16 : vector<24x1xi32> to vector<24x8xi32>
    %19 = arith.cmpi eq, %18, %17 : vector<24x8xi32>
    %cst_12 = arith.constant 1.000000e+00 : f32
    %cst_13 = arith.constant 0.000000e+00 : f32
    %20 = vector.broadcast %cst_12 : f32 to vector<24x8xf32>
    %21 = vector.broadcast %cst_13 : f32 to vector<24x8xf32>
    %22 = arith.select %19, %20, %21 : vector<24x8xi1>, vector<24x8xf32>
    %cst_14 = arith.constant dense<0.000000e+00> : vector<24x32xf32>
    %23 = tpu.matmul %8, %0, %cst_14 {dimension_numbers = #tpu.dot_dimension_numbers<[1], [0], [0], [1], [0, 0, 1, 1], [], []>} : vector<24x32xf32>, vector<32x32xf32>, vector<24x32xf32> -> vector<24x32xf32>
    %cst_15 = arith.constant dense<0.000000e+00> : vector<24x32xf32>
    %24 = tpu.matmul %22, %1, %cst_15 {dimension_numbers = #tpu.dot_dimension_numbers<[1], [0], [0], [1], [0, 0, 1, 1], [], []>} : vector<24x8xf32>, vector<8x32xf32>, vector<24x32xf32> -> vector<24x32xf32>
    %25 = arith.subf %23, %24 : vector<24x32xf32>
    %c0_16 = arith.constant 0 : index
    %c0_17 = arith.constant 0 : index
    %26 = vector.load %arg12[%c0_16, %c0_17] : memref<64x32xf32, #tpu.memory_space<vmem>>, vector<24x32xf32>
    tpu.vector_store %arg12[%c0_16, %c0_17], %25 {strides = array<i32>} : memref<64x32xf32, #tpu.memory_space<vmem>>, vector<24x32xf32>,
    %c24 = arith.constant 24 : index
    %c0_18 = arith.constant 0 : index
    %27 = vector.load %arg12[%c24, %c0_18] : memref<64x32xf32, #tpu.memory_space<vmem>>, vector<32x32xf32>
    tpu.vector_store %arg12[%c24, %c0_18], %0 {strides = array<i32>} : memref<64x32xf32, #tpu.memory_space<vmem>>, vector<32x32xf32>,
    %c56 = arith.constant 56 : index
    %c0_19 = arith.constant 0 : index
    %28 = vector.load %arg12[%c56, %c0_19] : memref<64x32xf32, #tpu.memory_space<vmem>>, vector<8x32xf32>
    tpu.vector_store %arg12[%c56, %c0_19], %1 {strides = array<i32>} : memref<64x32xf32, #tpu.memory_space<vmem>>, vector<8x32xf32>,
    %c0_20 = arith.constant 0 : index
    %c0_21 = arith.constant 0 : index
    %29 = vector.load %arg12[%c0_20, %c0_21] : memref<64x32xf32, #tpu.memory_space<vmem>>, vector<64x32xf32>
    %c0_22 = arith.constant 0 : index
    %c0_23 = arith.constant 0 : index
    %30 = vector.load %arg7[%c0_22, %c0_23] : memref<32x96xf32, #tpu.memory_space<vmem>>, vector<32x96xf32>
    %cst_24 = arith.constant dense<0.000000e+00> : vector<64x96xf32>
    %31 = tpu.matmul %29, %30, %cst_24 {dimension_numbers = #tpu.dot_dimension_numbers<[1], [0], [0], [1], [0, 0, 1, 1], [], []>} : vector<64x32xf32>, vector<32x96xf32>, vector<64x96xf32> -> vector<64x96xf32>
    %32 = vector.extract_strided_slice %31 {offsets = [0, 0], sizes = [24, 32], strides = [1, 1]} : vector<64x96xf32> to vector<24x32xf32>
    %33 = vector.extract_strided_slice %31 {offsets = [24, 32], sizes = [32, 32], strides = [1, 1]} : vector<64x96xf32> to vector<32x32xf32>
    %34 = vector.extract_strided_slice %31 {offsets = [56, 64], sizes = [8, 32], strides = [1, 1]} : vector<64x96xf32> to vector<8x32xf32>
    %cst_25 = arith.constant dense<0.000000e+00> : vector<32x32xf32>
    %35 = tpu.matmul %15, %32, %cst_25 {dimension_numbers = #tpu.dot_dimension_numbers<[0], [0], [1], [1], [0, 1, 1, 1], [], []>} : vector<24x32xf32>, vector<24x32xf32>, vector<32x32xf32> -> vector<32x32xf32>
    %cst_26 = arith.constant 1.000000e+00 : f32
    %36 = vector.broadcast %cst_26 : f32 to vector<24x1xf32>
    %cst_27 = arith.constant dense<0.000000e+00> : vector<32x1xf32>
    %37 = tpu.matmul %15, %36, %cst_27 {dimension_numbers = #tpu.dot_dimension_numbers<[0], [0], [1], [1], [0, 1, 1, 1], [], []>} : vector<24x32xf32>, vector<24x1xf32>, vector<32x1xf32> -> vector<32x1xf32>
    %cst_28 = arith.constant 1.000000e+00 : f32
    %38 = vector.broadcast %cst_28 : f32 to vector<32x1xf32>
    %39 = arith.maximumf %37, %38 : vector<32x1xf32>
    %40 = vector.broadcast %39 : vector<32x1xf32> to vector<32x32xf32>
    %41 = arith.divf %35, %40 : vector<32x32xf32>
    %42 = arith.addf %41, %33 : vector<32x32xf32>
    %c0_29 = arith.constant 0 : index
    %c0_30 = arith.constant 0 : index
    %43 = vector.load %arg8[%c0_29, %c0_30] : memref<1x32xf32, #tpu.memory_space<vmem>>, vector<1x32xf32>
    %44 = vector.broadcast %43 : vector<1x32xf32> to vector<32x32xf32>
    %45 = arith.addf %42, %44 : vector<32x32xf32>
    %46 = math.tanh %45 : vector<32x32xf32>
    %c0_31 = arith.constant 0 : index
    %c0_32 = arith.constant 0 : index
    %47 = vector.load %arg3[%c0_31, %c0_32] : memref<2x1xi32, #tpu.memory_space<vmem>>, vector<2x1xi32>
    %48 = tpu.iota {dimensions = array<i32: 1>} : vector<2x32xi32>
    %49 = vector.broadcast %47 : vector<2x1xi32> to vector<2x32xi32>
    %50 = arith.cmpi eq, %49, %48 : vector<2x32xi32>
    %cst_33 = arith.constant 1.000000e+00 : f32
    %cst_34 = arith.constant 0.000000e+00 : f32
    %51 = vector.broadcast %cst_33 : f32 to vector<2x32xf32>
    %52 = vector.broadcast %cst_34 : f32 to vector<2x32xf32>
    %53 = arith.select %50, %51, %52 : vector<2x32xi1>, vector<2x32xf32>
    %cst_35 = arith.constant dense<0.000000e+00> : vector<2x32xf32>
    %54 = tpu.matmul %53, %46, %cst_35 {dimension_numbers = #tpu.dot_dimension_numbers<[1], [0], [0], [1], [0, 0, 1, 1], [], []>} : vector<2x32xf32>, vector<32x32xf32>, vector<2x32xf32> -> vector<2x32xf32>
    %c0_36 = arith.constant 0 : index
    %c0_37 = arith.constant 0 : index
    %55 = vector.load %arg4[%c0_36, %c0_37] : memref<2x1xi32, #tpu.memory_space<vmem>>, vector<2x1xi32>
    %56 = tpu.iota {dimensions = array<i32: 1>} : vector<2x8xi32>
    %57 = vector.broadcast %55 : vector<2x1xi32> to vector<2x8xi32>
    %58 = arith.cmpi eq, %57, %56 : vector<2x8xi32>
    %cst_38 = arith.constant 1.000000e+00 : f32
    %cst_39 = arith.constant 0.000000e+00 : f32
    %59 = vector.broadcast %cst_38 : f32 to vector<2x8xf32>
    %60 = vector.broadcast %cst_39 : f32 to vector<2x8xf32>
    %61 = arith.select %58, %59, %60 : vector<2x8xi1>, vector<2x8xf32>
    %cst_40 = arith.constant dense<0.000000e+00> : vector<2x32xf32>
    %62 = tpu.matmul %61, %34, %cst_40 {dimension_numbers = #tpu.dot_dimension_numbers<[1], [0], [0], [1], [0, 0, 1, 1], [], []>} : vector<2x8xf32>, vector<8x32xf32>, vector<2x32xf32> -> vector<2x32xf32>
    %63 = arith.mulf %54, %62 : vector<2x32xf32>
    %c0_41 = arith.constant 0 : index
    %c0_42 = arith.constant 0 : index
    %64 = vector.load %arg11[%c0_41, %c0_42] : memref<2x32xf32, #tpu.memory_space<vmem>>, vector<2x32xf32>
    tpu.vector_store %arg11[%c0_41, %c0_42], %63 {strides = array<i32>} : memref<2x32xf32, #tpu.memory_space<vmem>>, vector<2x32xf32>,
    %cst_43 = arith.constant dense<0.000000e+00> : vector<2x32xf32>
    %65 = tpu.matmul %63, %46, %cst_43 {dimension_numbers = #tpu.dot_dimension_numbers<[1], [1], [0], [0], [0, 0, 1, 0], [], []>} : vector<2x32xf32>, vector<32x32xf32>, vector<2x32xf32> -> vector<2x32xf32>
    %c0_44 = arith.constant 0 : index
    %c0_45 = arith.constant 0 : index
    %66 = vector.load %arg9[%c0_44, %c0_45] : memref<1x32xf32, #tpu.memory_space<vmem>>, vector<1x32xf32>
    %67 = vector.broadcast %66 : vector<1x32xf32> to vector<2x32xf32>
    %68 = arith.addf %65, %67 : vector<2x32xf32>
    %c0_46 = arith.constant 0 : index
    %c0_47 = arith.constant 0 : index
    %69 = vector.load %arg10[%c0_46, %c0_47] : memref<2x32xf32, #tpu.memory_space<vmem>>, vector<2x32xf32>
    tpu.vector_store %arg10[%c0_46, %c0_47], %68 {strides = array<i32>} : memref<2x32xf32, #tpu.memory_space<vmem>>, vector<2x32xf32>,
    return
  }
}

</mosaic_0001>

<llo_original>
// kernel: stare_encoder_forward.1
$region0: #{stare_encoder_forward.1}
  #allocation0 [shape = 'u32[]', space=smem, size = 0x4, offset = 0x4, fixed_abs, tag = 'smem constant byte address 0x4 - core index']
  #allocation1 [shape = 'u32[144,128]{1,0:T(1,128)}', space=vmem, size = 0x12000, scoped, tag = 'internal scratch']
  #allocation2 [shape = 'f32[64,32]{1,0:T(8,128)}', space=vmem, size = 0x8000, scoped, tag = 'scratch operand']
  %s0 = inlined_call_operand.vmem [shape: s32[24,1], index: 0, kind: input, shape index: {}]
  %s1 = inlined_call_operand.vmem [shape: s32[24,1], index: 1, kind: input, shape index: {}]
  %s2 = inlined_call_operand.vmem [shape: s32[24,1], index: 2, kind: input, shape index: {}]
  %s3 = inlined_call_operand.vmem [shape: s32[2,1], index: 3, kind: input, shape index: {}]
  %s4 = inlined_call_operand.vmem [shape: s32[2,1], index: 4, kind: input, shape index: {}]
  %s5 = inlined_call_operand.vmem [shape: f32[32,32], index: 5, kind: input, shape index: {}]
  %s6 = inlined_call_operand.vmem [shape: f32[8,32], index: 6, kind: input, shape index: {}]
  %s7 = inlined_call_operand.vmem [shape: f32[32,96], index: 7, kind: input, shape index: {}]
  %s8 = inlined_call_operand.vmem [shape: f32[1,32], index: 8, kind: input, shape index: {}]
  %s9 = inlined_call_operand.vmem [shape: f32[1,32], index: 9, kind: input, shape index: {}]
  %s10 = inlined_call_operand.hbm [shape: f32[2,32], index: 10, kind: output, shape index: {0}]
  %s11 = inlined_call_operand.hbm [shape: f32[2,32], index: 11, kind: output, shape index: {1}]
  %12 = xla_tuple %s10, %s11
  %s13 = sld [smem:[#allocation0]]
  $region58: #{stare_encoder_forward.1} parent=0
    _
  %s15 = ssub.s32 1, %s13
  %s16 = scalar_select 0, %s15, %s13
  $region1: #{stare_encoder_forward.1} parent=0
    #allocation3 [shape = 'u8[1024]{0}', space=vmem, size = 0x400, scoped, tag = 'output window, operand 0, single buffered']
    #allocation4 [shape = 's32[1]{0}', space=sflag, size = 0x4, scoped, tag = 'scoped memory for stare_encoder_forward.1']
    #allocation5 [shape = 'u8[1024]{0}', space=vmem, size = 0x400, scoped, tag = 'output window, operand 1, single buffered']
    #allocation6 [shape = 's32[1]{0}', space=sflag, size = 0x4, scoped, tag = 'scoped memory for stare_encoder_forward.1']
    %17 = vsyncpa [#allocation4], 0
    %18 = vsyncpa [#allocation6], 0
    // Predicated region
    $region2: #{stare_encoder_forward.1} parent=1 // pred_check
      _
    $region3: #{stare_encoder_forward.1} parent=1 // pred_check_branch
      %20 = sbr.rel (0) target = $region5
    $region4: #{stare_encoder_forward.1} parent=1 // pred_region
      _
    $region5: #{stare_encoder_forward.1} parent=1 // pred_fallthru
      _
    // Predicated region
    $region6: #{stare_encoder_forward.1} parent=1 // pred_check
      _
    $region7: #{stare_encoder_forward.1} parent=1 // pred_check_branch
      %22 = sbr.rel (0) target = $region9
    $region8: #{stare_encoder_forward.1} parent=1 // pred_region
      _
    $region9: #{stare_encoder_forward.1} parent=1 // pred_fallthru
      _
    // Predicated region
    $region10: #{stare_encoder_forward.1} parent=1 // pred_check
      _
    $region11: #{stare_encoder_forward.1} parent=1 // pred_check_branch
      %24 = sbr.rel (0) target = $region13
    $region12: #{stare_encoder_forward.1} parent=1 // pred_region
      _
    $region13: #{stare_encoder_forward.1} parent=1 // pred_fallthru
      _
    // Predicated region
    $region14: #{stare_encoder_forward.1} parent=1 // pred_check
      _
    $region15: #{stare_encoder_forward.1} parent=1 // pred_check_branch
      %26 = sbr.rel (0) target = $region17
    $region16: #{stare_encoder_forward.1} parent=1 // pred_region
      _
    $region17: #{stare_encoder_forward.1} parent=1 // pred_fallthru
      _
    // Predicated region
    $region18: #{stare_encoder_forward.1} parent=1 // pred_check
      _
    $region19: #{stare_encoder_forward.1} parent=1 // pred_check_branch
      %28 = sbr.rel (0) target = $region21
    $region20: #{stare_encoder_forward.1} parent=1 // pred_region
      _
    $region21: #{stare_encoder_forward.1} parent=1 // pred_fallthru
      _
    // Predicated region
    $region22: #{stare_encoder_forward.1} parent=1 // pred_check
      _
    $region23: #{stare_encoder_forward.1} parent=1 // pred_check_branch
      %30 = sbr.rel (0) target = $region25
    $region24: #{stare_encoder_forward.1} parent=1 // pred_region
      _
    $region25: #{stare_encoder_forward.1} parent=1 // pred_fallthru
      _
    // Predicated region
    $region26: #{stare_encoder_forward.1} parent=1 // pred_check
      _
    $region27: #{stare_encoder_forward.1} parent=1 // pred_check_branch
      %32 = sbr.rel (0) target = $region29
    $region28: #{stare_encoder_forward.1} parent=1 // pred_region
      _
    $region29: #{stare_encoder_forward.1} parent=1 // pred_fallthru
      _
    // Predicated region
    $region30: #{stare_encoder_forward.1} parent=1 // pred_check
      _
    $region31: #{stare_encoder_forward.1} parent=1 // pred_check_branch
      %34 = sbr.rel (0) target = $region33
    $region32: #{stare_encoder_forward.1} parent=1 // pred_region
      _
    $region33: #{stare_encoder_forward.1} parent=1 // pred_fallthru
      _
    // Predicated region
    $region34: #{stare_encoder_forward.1} parent=1 // pred_check
      _
    $region35: #{stare_encoder_forward.1} parent=1 // pred_check_branch
      %36 = sbr.rel (0) target = $region37
    $region36: #{stare_encoder_forward.1} parent=1 // pred_region
      _
    $region37: #{stare_encoder_forward.1} parent=1 // pred_fallthru
      _
    // Predicated region
    $region38: #{stare_encoder_forward.1} parent=1 // pred_check
      _
    $region39: #{stare_encoder_forward.1} parent=1 // pred_check_branch
      %38 = sbr.rel (0) target = $region41
    $region40: #{stare_encoder_forward.1} parent=1 // pred_region
      _
    $region41: #{stare_encoder_forward.1} parent=1 // pred_fallthru
      _
    %v39 = vld [vmem:[%s5] sm:$0xff]
    %v40 = vld [vmem:[%s5 + $0x8] sm:$0xff]
    %v41 = vld [vmem:[%s5 + $0x10] sm:$0xff]
    %v42 = vld [vmem:[%s5 + $0x18] sm:$0xff]
    %v43 = vld [vmem:[%s6] sm:$0xff]
    %v44 = vld [vmem:[%s0] sm:$0xff]
    %v45 = vld [vmem:[%s0 + $0x8] sm:$0xff]
    %v46 = vld [vmem:[%s0 + $0x10] sm:$0xff]
    %v47 = vlaneseq
    %v48 = vand.u32 %v47, 127
    %49 = vset.pattern.permute.xlu0 0
    %50 = vperm.xlu0 %49, %v44
    %v51 = vpop.permute.xlu0 %50
    %52 = vset.pattern.permute.xlu0 0
    %53 = vperm.xlu0 %52, %v45
    %v54 = vpop.permute.xlu0 %53
    %55 = vset.pattern.permute.xlu0 0
    %56 = vperm.xlu0 %55, %v46
    %v57 = vpop.permute.xlu0 %56
    %vm58 = vcmp.eq.s32.totalorder %v51, %v48
    %vm59 = vcmp.eq.s32.totalorder %v54, %v48
    %vm60 = vcmp.eq.s32.totalorder %v57, %v48
    %v61 = vsel %vm58, 1.0, 0.0
    %v62 = vsel %vm59, 1.0, 0.0
    %v63 = vsel %vm60, 1.0, 0.0
    %v64 = vld [vmem:[%s1] sm:$0xff]
    %v65 = vld [vmem:[%s1 + $0x8] sm:$0xff]
    %v66 = vld [vmem:[%s1 + $0x10] sm:$0xff]
    %67 = vset.pattern.permute.xlu0 0
    %68 = vperm.xlu0 %67, %v64
    %v69 = vpop.permute.xlu0 %68
    %70 = vset.pattern.permute.xlu0 0
    %71 = vperm.xlu0 %70, %v65
    %v72 = vpop.permute.xlu0 %71
    %73 = vset.pattern.permute.xlu0 0
    %74 = vperm.xlu0 %73, %v66
    %v75 = vpop.permute.xlu0 %74
    %vm76 = vcmp.eq.s32.totalorder %v69, %v48
    %vm77 = vcmp.eq.s32.totalorder %v72, %v48
    %vm78 = vcmp.eq.s32.totalorder %v75, %v48
    %v79 = vsel %vm76, 1.0, 0.0
    %v80 = vsel %vm77, 1.0, 0.0
    %v81 = vsel %vm78, 1.0, 0.0
    %v82 = vld [vmem:[%s2] sm:$0xff]
    %v83 = vld [vmem:[%s2 + $0x8] sm:$0xff]
    %v84 = vld [vmem:[%s2 + $0x10] sm:$0xff]
    %85 = vset.pattern.permute.xlu0 0
    %86 = vperm.xlu0 %85, %v82
    %v87 = vpop.permute.xlu0 %86
    %88 = vset.pattern.permute.xlu0 0
    %89 = vperm.xlu0 %88, %v83
    %v90 = vpop.permute.xlu0 %89
    %91 = vset.pattern.permute.xlu0 0
    %92 = vperm.xlu0 %91, %v84
    %v93 = vpop.permute.xlu0 %92
    %vm94 = vcmp.eq.s32.totalorder %v87, %v48
    %vm95 = vcmp.eq.s32.totalorder %v90, %v48
    %vm96 = vcmp.eq.s32.totalorder %v93, %v48
    %v97 = vsel %vm94, 1.0, 0.0
    %v98 = vsel %vm95, 1.0, 0.0
    %v99 = vsel %vm96, 1.0, 0.0
    %vm100 = vcmask 261120
    %v102 = vsel %vm100, %v61, 0
    %v105 = vsel %vm100, %v62, 0
    %v108 = vsel %vm100, %v63, 0
    %110 = vmatprep.subr.mxu0 0.0
    %111 = vmatpush1.msra.mxu0 0.0
    %112 = vmatprep.subr.mxu0 0.0
    %113 = vmatpush1.msra.mxu0 0.0
    %114 = vmatprep.subr.mxu0 0.0
    %115 = vmatpush1.msra.mxu0 0.0
    %116 = vmatprep.subr.mxu0 0.0
    %117 = vmatpush1.msra.mxu0 0.0
    %118 = vmatprep.subr.mxu0 0.0
    %119 = vmatpush1.msra.mxu0 0.0
    %120 = vmatprep.subr.mxu0 0.0
    %121 = vmatpush1.msra.mxu0 0.0
    %122 = vmatprep.subr.mxu0 0.0
    %123 = vmatpush1.msra.mxu0 0.0
    %124 = vmatprep.subr.mxu0 0.0
    %125 = vmatpush1.msra.mxu0 0.0
    %126 = vmatprep.subr.mxu0 0.0
    %127 = vmatpush1.msra.mxu0 0.0
    %128 = vmatprep.subr.mxu0 0.0
    %129 = vmatpush1.msra.mxu0 0.0
    %130 = vmatprep.subr.mxu0 0.0
    %131 = vmatpush1.msra.mxu0 0.0
    %132 = vmatprep.subr.mxu0 0.0
    %133 = vmatpush1.msra.mxu0 0.0
    %134 = vmatprep.subr.mxu0 0.0
    %135 = vmatpush1.msra.mxu0 %v42
    %136 = vmatprep.subr.mxu0 0.0
    %137 = vmatpush1.msra.mxu0 %v41
    %138 = vmatprep.subr.mxu0 0.0
    %139 = vmatpush1.msra.mxu0 %v40
    %140 = vmatprep.subr.mxu0 0.0
    %141 = vmatpush1.msra.mxu0 %v39
    %142 = vmatprep.subr.mxu0 0.0
    %143 = vmatpush2.msra.mxu0 0.0
    %144 = vmatprep.subr.mxu0 0.0
    %145 = vmatpush2.msra.mxu0 0.0
    %146 = vmatprep.subr.mxu0 0.0
    %147 = vmatpush2.msra.mxu0 0.0
    %148 = vmatprep.subr.mxu0 0.0
    %149 = vmatpush2.msra.mxu0 0.0
    %150 = vmatprep.subr.mxu0 0.0
    %151 = vmatpush2.msra.mxu0 0.0
    %152 = vmatprep.subr.mxu0 0.0
    %153 = vmatpush2.msra.mxu0 0.0
    %154 = vmatprep.subr.mxu0 0.0
    %155 = vmatpush2.msra.mxu0 0.0
    %156 = vmatprep.subr.mxu0 0.0
    %157 = vmatpush2.msra.mxu0 0.0
    %158 = vmatprep.subr.mxu0 0.0
    %159 = vmatpush2.msra.mxu0 0.0
    %160 = vmatprep.subr.mxu0 0.0
    %161 = vmatpush2.msra.mxu0 0.0
    %162 = vmatprep.subr.mxu0 0.0
    %163 = vmatpush2.msra.mxu0 0.0
    %164 = vmatprep.subr.mxu0 0.0
    %165 = vmatpush2.msra.mxu0 0.0
    %166 = vmatprep.subr.mxu0 0.0
    %167 = vmatpush2.msra.mxu0 0.0
    %168 = vmatprep.subr.mxu0 0.0
    %169 = vmatpush2.msra.mxu0 0.0
    %170 = vmatprep.subr.mxu0 0.0
    %171 = vmatpush2.msra.mxu0 0.0
    %172 = vmatprep.subr.mxu0 0.0
    %173 = vmatpush2.msra.mxu0 0.0
    %174 = vmatprep.mubr.f32.mxu0 0.0
    %175 = vmatmul.mubr.f32.gmra.mxu0 %v102
    %v176 = vpop.f32.mrf.mxu0
    %v177 = vadd.f32 0.0, %v176
    %v178 = vpop.f32.mrf.mxu0
    %179 = vmatprep.mubr.f32.mxu0 0.0
    %180 = vmatmul.mubr.f32.gmra.mxu0 %v105
    %v181 = vpop.f32.mrf.mxu0
    %v182 = vadd.f32 0.0, %v181
    %v183 = vpop.f32.mrf.mxu0
    %184 = vmatprep.mubr.f32.mxu0 0.0
    %185 = vmatmul.mubr.f32.gmra.mxu0 %v108
    %v186 = vpop.f32.mrf.mxu0
    %v187 = vadd.f32 0.0, %v186
    %v188 = vpop.f32.mrf.mxu0
    %189 = vdwg.mxu0
    %vm190 = vcmask 64512
    %v192 = vsel %vm190, %v97, 0
    %v195 = vsel %vm190, %v98, 0
    %v198 = vsel %vm190, %v99, 0
    %200 = vmatprep.subr.mxu0 0.0
    %201 = vmatpush1.msra.mxu0 0.0
    %202 = vmatprep.subr.mxu0 0.0
    %203 = vmatpush1.msra.mxu0 0.0
    %204 = vmatprep.subr.mxu0 0.0
    %205 = vmatpush1.msra.mxu0 0.0
    %206 = vmatprep.subr.mxu0 0.0
    %207 = vmatpush1.msra.mxu0 0.0
    %208 = vmatprep.subr.mxu0 0.0
    %209 = vmatpush1.msra.mxu0 0.0
    %210 = vmatprep.subr.mxu0 0.0
    %211 = vmatpush1.msra.mxu0 0.0
    %212 = vmatprep.subr.mxu0 0.0
    %213 = vmatpush1.msra.mxu0 0.0
    %214 = vmatprep.subr.mxu0 0.0
    %215 = vmatpush1.msra.mxu0 0.0
    %216 = vmatprep.subr.mxu0 0.0
    %217 = vmatpush1.msra.mxu0 0.0
    %218 = vmatprep.subr.mxu0 0.0
    %219 = vmatpush1.msra.mxu0 0.0
    %220 = vmatprep.subr.mxu0 0.0
    %221 = vmatpush1.msra.mxu0 0.0
    %222 = vmatprep.subr.mxu0 0.0
    %223 = vmatpush1.msra.mxu0 0.0
    %224 = vmatprep.subr.mxu0 0.0
    %225 = vmatpush1.msra.mxu0 0.0
    %226 = vmatprep.subr.mxu0 0.0
    %227 = vmatpush1.msra.mxu0 0.0
    %228 = vmatprep.subr.mxu0 0.0
    %229 = vmatpush1.msra.mxu0 0.0
    %230 = vmatprep.subr.mxu0 0.0
    %231 = vmatpush1.msra.mxu0 %v43
    %232 = vmatprep.subr.mxu0 0.0
    %233 = vmatpush2.msra.mxu0 0.0
    %234 = vmatprep.subr.mxu0 0.0
    %235 = vmatpush2.msra.mxu0 0.0
    %236 = vmatprep.subr.mxu0 0.0
    %237 = vmatpush2.msra.mxu0 0.0
    %238 = vmatprep.subr.mxu0 0.0
    %239 = vmatpush2.msra.mxu0 0.0
    %240 = vmatprep.subr.mxu0 0.0
    %241 = vmatpush2.msra.mxu0 0.0
    %242 = vmatprep.subr.mxu0 0.0
    %243 = vmatpush2.msra.mxu0 0.0
    %244 = vmatprep.subr.mxu0 0.0
    %245 = vmatpush2.msra.mxu0 0.0
    %246 = vmatprep.subr.mxu0 0.0
    %247 = vmatpush2.msra.mxu0 0.0
    %248 = vmatprep.subr.mxu0 0.0
    %249 = vmatpush2.msra.mxu0 0.0
    %250 = vmatprep.subr.mxu0 0.0
    %251 = vmatpush2.msra.mxu0 0.0
    %252 = vmatprep.subr.mxu0 0.0
    %253 = vmatpush2.msra.mxu0 0.0
    %254 = vmatprep.subr.mxu0 0.0
    %255 = vmatpush2.msra.mxu0 0.0
    %256 = vmatprep.subr.mxu0 0.0
    %257 = vmatpush2.msra.mxu0 0.0
    %258 = vmatprep.subr.mxu0 0.0
    %259 = vmatpush2.msra.mxu0 0.0
    %260 = vmatprep.subr.mxu0 0.0
    %261 = vmatpush2.msra.mxu0 0.0
    %262 = vmatprep.subr.mxu0 0.0
    %263 = vmatpush2.msra.mxu0 0.0
    %264 = vmatprep.mubr.f32.mxu0 0.0
    %265 = vmatmul.mubr.f32.gmra.mxu0 %v192
    %v266 = vpop.f32.mrf.mxu0
    %v267 = vadd.f32 0.0, %v266
    %v268 = vpop.f32.mrf.mxu0
    %269 = vmatprep.mubr.f32.mxu0 0.0
    %270 = vmatmul.mubr.f32.gmra.mxu0 %v195
    %v271 = vpop.f32.mrf.mxu0
    %v272 = vadd.f32 0.0, %v271
    %v273 = vpop.f32.mrf.mxu0
    %274 = vmatprep.mubr.f32.mxu0 0.0
    %275 = vmatmul.mubr.f32.gmra.mxu0 %v198
    %v276 = vpop.f32.mrf.mxu0
    %v277 = vadd.f32 0.0, %v276
    %v278 = vpop.f32.mrf.mxu0
    %279 = vdwg.mxu0
    %v280 = vsub.f32 %v177, %v267
    %v281 = vsub.f32 %v182, %v272
    %v282 = vsub.f32 %v187, %v277
    %283 = vst.msk [vmem:[#allocation2] sm:$0xff] %vm100, %v280
    %284 = vst.msk [vmem:[#allocation2 + $0x8] sm:$0xff] %vm100, %v281
    %285 = vst.msk [vmem:[#allocation2 + $0x10] sm:$0xff] %vm100, %v282
    %286 = vst.msk [vmem:[#allocation2 + $0x18] sm:$0xff] %vm100, %v39
    %287 = vst.msk [vmem:[#allocation2 + $0x20] sm:$0xff] %vm100, %v40
    %288 = vst.msk [vmem:[#allocation2 + $0x28] sm:$0xff] %vm100, %v41
    %289 = vst.msk [vmem:[#allocation2 + $0x30] sm:$0xff] %vm100, %v42
    %290 = vst.msk [vmem:[#allocation2 + $0x38] sm:$0xff] %vm100, %v43
    %v291 = vld [vmem:[#allocation2] sm:$0xff]
    %v292 = vld [vmem:[#allocation2 + $0x8] sm:$0xff]
    %v293 = vld [vmem:[#allocation2 + $0x10] sm:$0xff]
    %v294 = vld [vmem:[#allocation2 + $0x18] sm:$0xff]
    %v295 = vld [vmem:[#allocation2 + $0x20] sm:$0xff]
    %v296 = vld [vmem:[#allocation2 + $0x28] sm:$0xff]
    %v297 = vld [vmem:[#allocation2 + $0x30] sm:$0xff]
    %v298 = vld [vmem:[#allocation2 + $0x38] sm:$0xff]
    %v299 = vld [vmem:[%s7] sm:$0xff]
    %v300 = vld [vmem:[%s7 + $0x8] sm:$0xff]
    %v301 = vld [vmem:[%s7 + $0x10] sm:$0xff]
    %v302 = vld [vmem:[%s7 + $0x18] sm:$0xff]
    %v304 = vsel %vm100, %v291, 0
    %v307 = vsel %vm100, %v292, 0
    %v310 = vsel %vm100, %v293, 0
    %v313 = vsel %vm100, %v294, 0
    %v316 = vsel %vm100, %v295, 0
    %v319 = vsel %vm100, %v296, 0
    %v322 = vsel %vm100, %v297, 0
    %v325 = vsel %vm100, %v298, 0
    %327 = vmatprep.subr.mxu0 0.0
    %328 = vmatpush1.msra.mxu0 0.0
    %329 = vmatprep.subr.mxu0 0.0
    %330 = vmatpush1.msra.mxu0 0.0
    %331 = vmatprep.subr.mxu0 0.0
    %332 = vmatpush1.msra.mxu0 0.0
    %333 = vmatprep.subr.mxu0 0.0
    %334 = vmatpush1.msra.mxu0 0.0
    %335 = vmatprep.subr.mxu0 0.0
    %336 = vmatpush1.msra.mxu0 0.0
    %337 = vmatprep.subr.mxu0 0.0
    %338 = vmatpush1.msra.mxu0 0.0
    %339 = vmatprep.subr.mxu0 0.0
    %340 = vmatpush1.msra.mxu0 0.0
    %341 = vmatprep.subr.mxu0 0.0
    %342 = vmatpush1.msra.mxu0 0.0
    %343 = vmatprep.subr.mxu0 0.0
    %344 = vmatpush1.msra.mxu0 0.0
    %345 = vmatprep.subr.mxu0 0.0
    %346 = vmatpush1.msra.mxu0 0.0
    %347 = vmatprep.subr.mxu0 0.0
    %348 = vmatpush1.msra.mxu0 0.0
    %349 = vmatprep.subr.mxu0 0.0
    %350 = vmatpush1.msra.mxu0 0.0
    %351 = vmatprep.subr.mxu0 0.0
    %352 = vmatpush1.msra.mxu0 %v302
    %353 = vmatprep.subr.mxu0 0.0
    %354 = vmatpush1.msra.mxu0 %v301
    %355 = vmatprep.subr.mxu0 0.0
    %356 = vmatpush1.msra.mxu0 %v300
    %357 = vmatprep.subr.mxu0 0.0
    %358 = vmatpush1.msra.mxu0 %v299
    %359 = vmatprep.subr.mxu0 0.0
    %360 = vmatpush2.msra.mxu0 0.0
    %361 = vmatprep.subr.mxu0 0.0
    %362 = vmatpush2.msra.mxu0 0.0
    %363 = vmatprep.subr.mxu0 0.0
    %364 = vmatpush2.msra.mxu0 0.0
    %365 = vmatprep.subr.mxu0 0.0
    %366 = vmatpush2.msra.mxu0 0.0
    %367 = vmatprep.subr.mxu0 0.0
    %368 = vmatpush2.msra.mxu0 0.0
    %369 = vmatprep.subr.mxu0 0.0
    %370 = vmatpush2.msra.mxu0 0.0
    %371 = vmatprep.subr.mxu0 0.0
    %372 = vmatpush2.msra.mxu0 0.0
    %373 = vmatprep.subr.mxu0 0.0
    %374 = vmatpush2.msra.mxu0 0.0
    %375 = vmatprep.subr.mxu0 0.0
    %376 = vmatpush2.msra.mxu0 0.0
    %377 = vmatprep.subr.mxu0 0.0
    %378 = vmatpush2.msra.mxu0 0.0
    %379 = vmatprep.subr.mxu0 0.0
    %380 = vmatpush2.msra.mxu0 0.0
    %381 = vmatprep.subr.mxu0 0.0
    %382 = vmatpush2.msra.mxu0 0.0
    %383 = vmatprep.subr.mxu0 0.0
    %384 = vmatpush2.msra.mxu0 0.0
    %385 = vmatprep.subr.mxu0 0.0
    %386 = vmatpush2.msra.mxu0 0.0
    %387 = vmatprep.subr.mxu0 0.0
    %388 = vmatpush2.msra.mxu0 0.0
    %389 = vmatprep.subr.mxu0 0.0
    %390 = vmatpush2.msra.mxu0 0.0
    %391 = vmatprep.mubr.f32.mxu0 0.0
    %392 = vmatmul.mubr.f32.gmra.mxu0 %v304
    %v393 = vpop.f32.mrf.mxu0
    %v394 = vadd.f32 0.0, %v393
    %v395 = vpop.f32.mrf.mxu0
    %396 = vmatprep.mubr.f32.mxu0 0.0
    %397 = vmatmul.mubr.f32.gmra.mxu0 %v307
    %v398 = vpop.f32.mrf.mxu0
    %v399 = vadd.f32 0.0, %v398
    %v400 = vpop.f32.mrf.mxu0
    %401 = vmatprep.mubr.f32.mxu0 0.0
    %402 = vmatmul.mubr.f32.gmra.mxu0 %v310
    %v403 = vpop.f32.mrf.mxu0
    %v404 = vadd.f32 0.0, %v403
    %v405 = vpop.f32.mrf.mxu0
    %406 = vmatprep.mubr.f32.mxu0 0.0
    %407 = vmatmul.mubr.f32.gmra.mxu0 %v313
    %v408 = vpop.f32.mrf.mxu0
    %v409 = vadd.f32 0.0, %v408
    %v410 = vpop.f32.mrf.mxu0
    %411 = vmatprep.mubr.f32.mxu0 0.0
    %412 = vmatmul.mubr.f32.gmra.mxu0 %v316
    %v413 = vpop.f32.mrf.mxu0
    %v414 = vadd.f32 0.0, %v413
    %v415 = vpop.f32.mrf.mxu0
    %416 = vmatprep.mubr.f32.mxu0 0.0
    %417 = vmatmul.mubr.f32.gmra.mxu0 %v319
    %v418 = vpop.f32.mrf.mxu0
    %v419 = vadd.f32 0.0, %v418
    %v420 = vpop.f32.mrf.mxu0
    %421 = vmatprep.mubr.f32.mxu0 0.0
    %422 = vmatmul.mubr.f32.gmra.mxu0 %v322
    %v423 = vpop.f32.mrf.mxu0
    %v424 = vadd.f32 0.0, %v423
    %v425 = vpop.f32.mrf.mxu0
    %426 = vmatprep.mubr.f32.mxu0 0.0
    %427 = vmatmul.mubr.f32.gmra.mxu0 %v325
    %v428 = vpop.f32.mrf.mxu0
    %v429 = vadd.f32 0.0, %v428
    %v430 = vpop.f32.mrf.mxu0
    %431 = vdwg.mxu0
    %432 = vxpose.xlu0.b32.start [1/16] %v79, 128
    %433 = vxpose.xlu0.b32.cont [2/16] %v80, 128
    %434 = vxpose.xlu0.b32.cont [3/16] %v81, 128
    %435 = vxpose.xlu0.b32.cont [4/16] 0.0, 128
    %436 = vxpose.xlu0.b32.cont [5/16] 0.0, 128
    %437 = vxpose.xlu0.b32.cont [6/16] 0.0, 128
    %438 = vxpose.xlu0.b32.cont [7/16] 0.0, 128
    %439 = vxpose.xlu0.b32.cont [8/16] 0.0, 128
    %440 = vxpose.xlu0.b32.cont [9/16] 0.0, 128
    %441 = vxpose.xlu0.b32.cont [10/16] 0.0, 128
    %442 = vxpose.xlu0.b32.cont [11/16] 0.0, 128
    %443 = vxpose.xlu0.b32.cont [12/16] 0.0, 128
    %444 = vxpose.xlu0.b32.cont [13/16] 0.0, 128
    %445 = vxpose.xlu0.b32.cont [14/16] 0.0, 128
    %446 = vxpose.xlu0.b32.cont [15/16] 0.0, 128
    %447 = vxpose.xlu0.b32.end [16/16] 0.0, 128
    %v448 = vpop.trf.xlu0
    %v449 = vpop.trf.xlu0
    %v450 = vpop.trf.xlu0
    %v451 = vpop.trf.xlu0
    %v452 = vpop.trf.xlu0
    %v453 = vpop.trf.xlu0
    %v454 = vpop.trf.xlu0
    %v455 = vpop.trf.xlu0
    %v456 = vpop.trf.xlu0
    %v457 = vpop.trf.xlu0
    %v458 = vpop.trf.xlu0
    %v459 = vpop.trf.xlu0
    %v460 = vpop.trf.xlu0
    %v461 = vpop.trf.xlu0
    %v462 = vpop.trf.xlu0
    %v463 = vpop.trf.xlu0
    %vm464 = vcmask 195584
    %v466 = vsel %vm464, %v448, 0
    %v469 = vsel %vm464, %v449, 0
    %v472 = vsel %vm464, %v450, 0
    %v475 = vsel %vm464, %v451, 0
    %477 = vmatprep.subr.mxu0 0.0
    %478 = vmatpush1.msra.mxu0 0.0
    %479 = vmatprep.subr.mxu0 0.0
    %480 = vmatpush1.msra.mxu0 0.0
    %481 = vmatprep.subr.mxu0 0.0
    %482 = vmatpush1.msra.mxu0 0.0
    %483 = vmatprep.subr.mxu0 0.0
    %484 = vmatpush1.msra.mxu0 0.0
    %485 = vmatprep.subr.mxu0 0.0
    %486 = vmatpush1.msra.mxu0 0.0
    %487 = vmatprep.subr.mxu0 0.0
    %488 = vmatpush1.msra.mxu0 0.0
    %489 = vmatprep.subr.mxu0 0.0
    %490 = vmatpush1.msra.mxu0 0.0
    %491 = vmatprep.subr.mxu0 0.0
    %492 = vmatpush1.msra.mxu0 0.0
    %493 = vmatprep.subr.mxu0 0.0
    %494 = vmatpush1.msra.mxu0 0.0
    %495 = vmatprep.subr.mxu0 0.0
    %496 = vmatpush1.msra.mxu0 0.0
    %497 = vmatprep.subr.mxu0 0.0
    %498 = vmatpush1.msra.mxu0 0.0
    %499 = vmatprep.subr.mxu0 0.0
    %500 = vmatpush1.msra.mxu0 0.0
    %501 = vmatprep.subr.mxu0 0.0
    %502 = vmatpush1.msra.mxu0 0.0
    %503 = vmatprep.subr.mxu0 0.0
    %504 = vmatpush1.msra.mxu0 %v404
    %505 = vmatprep.subr.mxu0 0.0
    %506 = vmatpush1.msra.mxu0 %v399
    %507 = vmatprep.subr.mxu0 0.0
    %508 = vmatpush1.msra.mxu0 %v394
    %509 = vmatprep.subr.mxu0 0.0
    %510 = vmatpush2.msra.mxu0 0.0
    %511 = vmatprep.subr.mxu0 0.0
    %512 = vmatpush2.msra.mxu0 0.0
    %513 = vmatprep.subr.mxu0 0.0
    %514 = vmatpush2.msra.mxu0 0.0
    %515 = vmatprep.subr.mxu0 0.0
    %516 = vmatpush2.msra.mxu0 0.0
    %517 = vmatprep.subr.mxu0 0.0
    %518 = vmatpush2.msra.mxu0 0.0
    %519 = vmatprep.subr.mxu0 0.0
    %520 = vmatpush2.msra.mxu0 0.0
    %521 = vmatprep.subr.mxu0 0.0
    %522 = vmatpush2.msra.mxu0 0.0
    %523 = vmatprep.subr.mxu0 0.0
    %524 = vmatpush2.msra.mxu0 0.0
    %525 = vmatprep.subr.mxu0 0.0
    %526 = vmatpush2.msra.mxu0 0.0
    %527 = vmatprep.subr.mxu0 0.0
    %528 = vmatpush2.msra.mxu0 0.0
    %529 = vmatprep.subr.mxu0 0.0
    %530 = vmatpush2.msra.mxu0 0.0
    %531 = vmatprep.subr.mxu0 0.0
    %532 = vmatpush2.msra.mxu0 0.0
    %533 = vmatprep.subr.mxu0 0.0
    %534 = vmatpush2.msra.mxu0 0.0
    %535 = vmatprep.subr.mxu0 0.0
    %536 = vmatpush2.msra.mxu0 0.0
    %537 = vmatprep.subr.mxu0 0.0
    %538 = vmatpush2.msra.mxu0 0.0
    %539 = vmatprep.subr.mxu0 0.0
    %540 = vmatpush2.msra.mxu0 0.0
    %541 = vmatprep.mubr.f32.mxu0 0.0
    %542 = vmatmul.mubr.f32.gmra.mxu0 %v466
    %v543 = vpop.f32.mrf.mxu0
    %v544 = vadd.f32 0.0, %v543
    %v545 = vpop.f32.mrf.mxu0
    %546 = vmatprep.mubr.f32.mxu0 0.0
    %547 = vmatmul.mubr.f32.gmra.mxu0 %v469
    %v548 = vpop.f32.mrf.mxu0
    %v549 = vadd.f32 0.0, %v548
    %v550 = vpop.f32.mrf.mxu0
    %551 = vmatprep.mubr.f32.mxu0 0.0
    %552 = vmatmul.mubr.f32.gmra.mxu0 %v472
    %v553 = vpop.f32.mrf.mxu0
    %v554 = vadd.f32 0.0, %v553
    %v555 = vpop.f32.mrf.mxu0
    %556 = vmatprep.mubr.f32.mxu0 0.0
    %557 = vmatmul.mubr.f32.gmra.mxu0 %v475
    %v558 = vpop.f32.mrf.mxu0
    %v559 = vadd.f32 0.0, %v558
    %v560 = vpop.f32.mrf.mxu0
    %561 = vdwg.mxu0
    %562 = vmatprep.subr.mxu0 0.0
    %563 = vmatpush1.msra.mxu0 0.0
    %564 = vmatprep.subr.mxu0 0.0
    %565 = vmatpush1.msra.mxu0 0.0
    %566 = vmatprep.subr.mxu0 0.0
    %567 = vmatpush1.msra.mxu0 0.0
    %568 = vmatprep.subr.mxu0 0.0
    %569 = vmatpush1.msra.mxu0 0.0
    %570 = vmatprep.subr.mxu0 0.0
    %571 = vmatpush1.msra.mxu0 0.0
    %572 = vmatprep.subr.mxu0 0.0
    %573 = vmatpush1.msra.mxu0 0.0
    %574 = vmatprep.subr.mxu0 0.0
    %575 = vmatpush1.msra.mxu0 0.0
    %576 = vmatprep.subr.mxu0 0.0
    %577 = vmatpush1.msra.mxu0 0.0
    %578 = vmatprep.subr.mxu0 0.0
    %579 = vmatpush1.msra.mxu0 0.0
    %580 = vmatprep.subr.mxu0 0.0
    %581 = vmatpush1.msra.mxu0 0.0
    %582 = vmatprep.subr.mxu0 0.0
    %583 = vmatpush1.msra.mxu0 0.0
    %584 = vmatprep.subr.mxu0 0.0
    %585 = vmatpush1.msra.mxu0 0.0
    %586 = vmatprep.subr.mxu0 0.0
    %587 = vmatpush1.msra.mxu0 0.0
    %588 = vmatprep.subr.mxu0 0.0
    %589 = vmatpush1.msra.mxu0 1.0
    %590 = vmatprep.subr.mxu0 0.0
    %591 = vmatpush1.msra.mxu0 1.0
    %592 = vmatprep.subr.mxu0 0.0
    %593 = vmatpush1.msra.mxu0 1.0
    %594 = vmatprep.subr.mxu0 0.0
    %595 = vmatpush2.msra.mxu0 0.0
    %596 = vmatprep.subr.mxu0 0.0
    %597 = vmatpush2.msra.mxu0 0.0
    %598 = vmatprep.subr.mxu0 0.0
    %599 = vmatpush2.msra.mxu0 0.0
    %600 = vmatprep.subr.mxu0 0.0
    %601 = vmatpush2.msra.mxu0 0.0
    %602 = vmatprep.subr.mxu0 0.0
    %603 = vmatpush2.msra.mxu0 0.0
    %604 = vmatprep.subr.mxu0 0.0
    %605 = vmatpush2.msra.mxu0 0.0
    %606 = vmatprep.subr.mxu0 0.0
    %607 = vmatpush2.msra.mxu0 0.0
    %608 = vmatprep.subr.mxu0 0.0
    %609 = vmatpush2.msra.mxu0 0.0
    %610 = vmatprep.subr.mxu0 0.0
    %611 = vmatpush2.msra.mxu0 0.0
    %612 = vmatprep.subr.mxu0 0.0
    %613 = vmatpush2.msra.mxu0 0.0
    %614 = vmatprep.subr.mxu0 0.0
    %615 = vmatpush2.msra.mxu0 0.0
    %616 = vmatprep.subr.mxu0 0.0
    %617 = vmatpush2.msra.mxu0 0.0
    %618 = vmatprep.subr.mxu0 0.0
    %619 = vmatpush2.msra.mxu0 0.0
    %620 = vmatprep.subr.mxu0 0.0
    %621 = vmatpush2.msra.mxu0 0.0
    %622 = vmatprep.subr.mxu0 0.0
    %623 = vmatpush2.msra.mxu0 0.0
    %624 = vmatprep.subr.mxu0 0.0
    %625 = vmatpush2.msra.mxu0 0.0
    %626 = vmatprep.mubr.f32.mxu0 0.0
    %627 = vmatmul.mubr.f32.gmra.mxu0 %v466
    %v628 = vpop.f32.mrf.mxu0
    %v629 = vadd.f32 0.0, %v628
    %v630 = vpop.f32.mrf.mxu0
    %631 = vmatprep.mubr.f32.mxu0 0.0
    %632 = vmatmul.mubr.f32.gmra.mxu0 %v469
    %v633 = vpop.f32.mrf.mxu0
    %v634 = vadd.f32 0.0, %v633
    %v635 = vpop.f32.mrf.mxu0
    %636 = vmatprep.mubr.f32.mxu0 0.0
    %637 = vmatmul.mubr.f32.gmra.mxu0 %v472
    %v638 = vpop.f32.mrf.mxu0
    %v639 = vadd.f32 0.0, %v638
    %v640 = vpop.f32.mrf.mxu0
    %641 = vmatprep.mubr.f32.mxu0 0.0
    %642 = vmatmul.mubr.f32.gmra.mxu0 %v475
    %v643 = vpop.f32.mrf.mxu0
    %v644 = vadd.f32 0.0, %v643
    %v645 = vpop.f32.mrf.mxu0
    %646 = vdwg.mxu0
    %v647 = vmax.f32 %v629, 1.0
    %v648 = vmax.f32 %v634, 1.0
    %v649 = vmax.f32 %v639, 1.0
    %v650 = vmax.f32 %v644, 1.0
    %652 = vset.pattern.permute.xlu0 0
    %653 = vperm.xlu0 %652, %v647
    %v654 = vpop.permute.xlu0 %653
    %657 = vset.pattern.permute.xlu0 0
    %658 = vperm.xlu0 %657, %v648
    %v659 = vpop.permute.xlu0 %658
    %662 = vset.pattern.permute.xlu0 0
    %663 = vperm.xlu0 %662, %v649
    %v664 = vpop.permute.xlu0 %663
    %667 = vset.pattern.permute.xlu0 0
    %668 = vperm.xlu0 %667, %v650
    %v669 = vpop.permute.xlu0 %668
    %v671 = vrcp.pop %v654
    %v672 = vmul.f32 %v544, %v671
    %v673 = vrcp.pop %v659
    %v674 = vmul.f32 %v549, %v673
    %v675 = vrcp.pop %v664
    %v676 = vmul.f32 %v554, %v675
    %v677 = vrcp.pop %v669
    %v678 = vmul.f32 %v559, %v677
    %683 = vrot.lane.b32.xlu0 %v409, 96
    %v684 = vpop.permute.xlu0 %683
    %685 = vrot.lane.b32.xlu0 %v414, 96
    %v686 = vpop.permute.xlu0 %685
    %687 = vrot.lane.b32.xlu0 %v419, 96
    %v688 = vpop.permute.xlu0 %687
    %689 = vrot.lane.b32.xlu0 %v424, 96
    %v690 = vpop.permute.xlu0 %689
    %v695 = vadd.f32 %v672, %v684
    %v696 = vadd.f32 %v674, %v686
    %v697 = vadd.f32 %v676, %v688
    %v698 = vadd.f32 %v678, %v690
    %v699 = vld [vmem:[%s8] sm:$0x1]
    %v701 = vlaneseq
    %v702 = vshrl.u32 %v701, 7
    %v703 = vsub.s32 0, %v702
    %v704 = vrot.slane %v699, %v703
    %v706 = vadd.f32 %v695, %v704
    %v707 = vadd.f32 %v696, %v704
    %v708 = vadd.f32 %v697, %v704
    %v709 = vadd.f32 %v698, %v704
    %v710 = vtanh.pop %v706
    %v711 = vtanh.pop %v707
    %v712 = vtanh.pop %v708
    %v713 = vtanh.pop %v709
    %v714 = vld [vmem:[%s3] sm:$0x3]
    %715 = vset.pattern.permute.xlu0 0
    %716 = vperm.xlu0 %715, %v714
    %v717 = vpop.permute.xlu0 %716
    %vm718 = vcmp.eq.s32.totalorder %v717, %v48
    %v719 = vsel %vm718, 1.0, 0.0
    %v721 = vsel %vm100, %v719, 0
    %723 = vmatprep.subr.mxu0 0.0
    %724 = vmatpush1.msra.mxu0 0.0
    %725 = vmatprep.subr.mxu0 0.0
    %726 = vmatpush1.msra.mxu0 0.0
    %727 = vmatprep.subr.mxu0 0.0
    %728 = vmatpush1.msra.mxu0 0.0
    %729 = vmatprep.subr.mxu0 0.0
    %730 = vmatpush1.msra.mxu0 0.0
    %731 = vmatprep.subr.mxu0 0.0
    %732 = vmatpush1.msra.mxu0 0.0
    %733 = vmatprep.subr.mxu0 0.0
    %734 = vmatpush1.msra.mxu0 0.0
    %735 = vmatprep.subr.mxu0 0.0
    %736 = vmatpush1.msra.mxu0 0.0
    %737 = vmatprep.subr.mxu0 0.0
    %738 = vmatpush1.msra.mxu0 0.0
    %739 = vmatprep.subr.mxu0 0.0
    %740 = vmatpush1.msra.mxu0 0.0
    %741 = vmatprep.subr.mxu0 0.0
    %742 = vmatpush1.msra.mxu0 0.0
    %743 = vmatprep.subr.mxu0 0.0
    %744 = vmatpush1.msra.mxu0 0.0
    %745 = vmatprep.subr.mxu0 0.0
    %746 = vmatpush1.msra.mxu0 0.0
    %747 = vmatprep.subr.mxu0 0.0
    %748 = vmatpush1.msra.mxu0 %v713
    %749 = vmatprep.subr.mxu0 0.0
    %750 = vmatpush1.msra.mxu0 %v712
    %751 = vmatprep.subr.mxu0 0.0
    %752 = vmatpush1.msra.mxu0 %v711
    %753 = vmatprep.subr.mxu0 0.0
    %754 = vmatpush1.msra.mxu0 %v710
    %755 = vmatprep.subr.mxu0 0.0
    %756 = vmatpush2.msra.mxu0 0.0
    %757 = vmatprep.subr.mxu0 0.0
    %758 = vmatpush2.msra.mxu0 0.0
    %759 = vmatprep.subr.mxu0 0.0
    %760 = vmatpush2.msra.mxu0 0.0
    %761 = vmatprep.subr.mxu0 0.0
    %762 = vmatpush2.msra.mxu0 0.0
    %763 = vmatprep.subr.mxu0 0.0
    %764 = vmatpush2.msra.mxu0 0.0
    %765 = vmatprep.subr.mxu0 0.0
    %766 = vmatpush2.msra.mxu0 0.0
    %767 = vmatprep.subr.mxu0 0.0
    %768 = vmatpush2.msra.mxu0 0.0
    %769 = vmatprep.subr.mxu0 0.0
    %770 = vmatpush2.msra.mxu0 0.0
    %771 = vmatprep.subr.mxu0 0.0
    %772 = vmatpush2.msra.mxu0 0.0
    %773 = vmatprep.subr.mxu0 0.0
    %774 = vmatpush2.msra.mxu0 0.0
    %775 = vmatprep.subr.mxu0 0.0
    %776 = vmatpush2.msra.mxu0 0.0
    %777 = vmatprep.subr.mxu0 0.0
    %778 = vmatpush2.msra.mxu0 0.0
    %779 = vmatprep.subr.mxu0 0.0
    %780 = vmatpush2.msra.mxu0 0.0
    %781 = vmatprep.subr.mxu0 0.0
    %782 = vmatpush2.msra.mxu0 0.0
    %783 = vmatprep.subr.mxu0 0.0
    %784 = vmatpush2.msra.mxu0 0.0
    %785 = vmatprep.subr.mxu0 0.0
    %786 = vmatpush2.msra.mxu0 0.0
    %787 = vmatprep.mubr.f32.mxu0 0.0
    %788 = vmatmul.mubr.f32.gmra.mxu0 %v721
    %v789 = vpop.f32.mrf.mxu0
    %v790 = vadd.f32 0.0, %v789
    %v791 = vpop.f32.mrf.mxu0
    %792 = vdwg.mxu0
    %v793 = vld [vmem:[%s4] sm:$0x3]
    %794 = vset.pattern.permute.xlu0 0
    %795 = vperm.xlu0 %794, %v793
    %v796 = vpop.permute.xlu0 %795
    %vm797 = vcmp.eq.s32.totalorder %v796, %v48
    %v798 = vsel %vm797, 1.0, 0.0
    %800 = vrot.lane.b32.xlu0 %v429, 64
    %v801 = vpop.permute.xlu0 %800
    %v804 = vsel %vm190, %v798, 0
    %806 = vmatprep.subr.mxu0 0.0
    %807 = vmatpush1.msra.mxu0 0.0
    %808 = vmatprep.subr.mxu0 0.0
    %809 = vmatpush1.msra.mxu0 0.0
    %810 = vmatprep.subr.mxu0 0.0
    %811 = vmatpush1.msra.mxu0 0.0
    %812 = vmatprep.subr.mxu0 0.0
    %813 = vmatpush1.msra.mxu0 0.0
    %814 = vmatprep.subr.mxu0 0.0
    %815 = vmatpush1.msra.mxu0 0.0
    %816 = vmatprep.subr.mxu0 0.0
    %817 = vmatpush1.msra.mxu0 0.0
    %818 = vmatprep.subr.mxu0 0.0
    %819 = vmatpush1.msra.mxu0 0.0
    %820 = vmatprep.subr.mxu0 0.0
    %821 = vmatpush1.msra.mxu0 0.0
    %822 = vmatprep.subr.mxu0 0.0
    %823 = vmatpush1.msra.mxu0 0.0
    %824 = vmatprep.subr.mxu0 0.0
    %825 = vmatpush1.msra.mxu0 0.0
    %826 = vmatprep.subr.mxu0 0.0
    %827 = vmatpush1.msra.mxu0 0.0
    %828 = vmatprep.subr.mxu0 0.0
    %829 = vmatpush1.msra.mxu0 0.0
    %830 = vmatprep.subr.mxu0 0.0
    %831 = vmatpush1.msra.mxu0 0.0
    %832 = vmatprep.subr.mxu0 0.0
    %833 = vmatpush1.msra.mxu0 0.0
    %834 = vmatprep.subr.mxu0 0.0
    %835 = vmatpush1.msra.mxu0 0.0
    %836 = vmatprep.subr.mxu0 0.0
    %837 = vmatpush1.msra.mxu0 %v801
    %838 = vmatprep.subr.mxu0 0.0
    %839 = vmatpush2.msra.mxu0 0.0
    %840 = vmatprep.subr.mxu0 0.0
    %841 = vmatpush2.msra.mxu0 0.0
    %842 = vmatprep.subr.mxu0 0.0
    %843 = vmatpush2.msra.mxu0 0.0
    %844 = vmatprep.subr.mxu0 0.0
    %845 = vmatpush2.msra.mxu0 0.0
    %846 = vmatprep.subr.mxu0 0.0
    %847 = vmatpush2.msra.mxu0 0.0
    %848 = vmatprep.subr.mxu0 0.0
    %849 = vmatpush2.msra.mxu0 0.0
    %850 = vmatprep.subr.mxu0 0.0
    %851 = vmatpush2.msra.mxu0 0.0
    %852 = vmatprep.subr.mxu0 0.0
    %853 = vmatpush2.msra.mxu0 0.0
    %854 = vmatprep.subr.mxu0 0.0
    %855 = vmatpush2.msra.mxu0 0.0
    %856 = vmatprep.subr.mxu0 0.0
    %857 = vmatpush2.msra.mxu0 0.0
    %858 = vmatprep.subr.mxu0 0.0
    %859 = vmatpush2.msra.mxu0 0.0
    %860 = vmatprep.subr.mxu0 0.0
    %861 = vmatpush2.msra.mxu0 0.0
    %862 = vmatprep.subr.mxu0 0.0
    %863 = vmatpush2.msra.mxu0 0.0
    %864 = vmatprep.subr.mxu0 0.0
    %865 = vmatpush2.msra.mxu0 0.0
    %866 = vmatprep.subr.mxu0 0.0
    %867 = vmatpush2.msra.mxu0 0.0
    %868 = vmatprep.subr.mxu0 0.0
    %869 = vmatpush2.msra.mxu0 0.0
    %870 = vmatprep.mubr.f32.mxu0 0.0
    %871 = vmatmul.mubr.f32.gmra.mxu0 %v804
    %v872 = vpop.f32.mrf.mxu0
    %v873 = vadd.f32 0.0, %v872
    %v874 = vpop.f32.mrf.mxu0
    %875 = vdwg.mxu0
    %v876 = vmul.f32 %v790, %v873
    %vm877 = vcmask 254976
    %878 = vst.msk [vmem:[#allocation5] sm:$0x3] %vm877, %v876
    %v879 = vld [vmem:[%s9] sm:$0x1]
    %v881 = vlaneseq
    %v882 = vshrl.u32 %v881, 7
    %v883 = vsub.s32 0, %v882
    %v884 = vrot.slane %v879, %v883
    %v887 = vsel %vm100, %v876, 0
    %v890 = vsel %vm100, %v710, 0
    %v893 = vsel %vm100, %v711, 0
    %v896 = vsel %vm100, %v712, 0
    %v899 = vsel %vm100, %v713, 0
    %901 = vmatprep.subr.mxu0 0.0
    %902 = vmatpush1.xpose.msra.mxu0 0.0
    %903 = vmatprep.subr.mxu0 0.0
    %904 = vmatpush1.xpose.msra.mxu0 0.0
    %905 = vmatprep.subr.mxu0 0.0
    %906 = vmatpush1.xpose.msra.mxu0 0.0
    %907 = vmatprep.subr.mxu0 0.0
    %908 = vmatpush1.xpose.msra.mxu0 0.0
    %909 = vmatprep.subr.mxu0 0.0
    %910 = vmatpush1.xpose.msra.mxu0 0.0
    %911 = vmatprep.subr.mxu0 0.0
    %912 = vmatpush1.xpose.msra.mxu0 0.0
    %913 = vmatprep.subr.mxu0 0.0
    %914 = vmatpush1.xpose.msra.mxu0 0.0
    %915 = vmatprep.subr.mxu0 0.0
    %916 = vmatpush1.xpose.msra.mxu0 0.0
    %917 = vmatprep.subr.mxu0 0.0
    %918 = vmatpush1.xpose.msra.mxu0 0.0
    %919 = vmatprep.subr.mxu0 0.0
    %920 = vmatpush1.xpose.msra.mxu0 0.0
    %921 = vmatprep.subr.mxu0 0.0
    %922 = vmatpush1.xpose.msra.mxu0 0.0
    %923 = vmatprep.subr.mxu0 0.0
    %924 = vmatpush1.xpose.msra.mxu0 0.0
    %925 = vmatprep.subr.mxu0 0.0
    %926 = vmatpush1.xpose.msra.mxu0 %v899
    %927 = vmatprep.subr.mxu0 0.0
    %928 = vmatpush1.xpose.msra.mxu0 %v896
    %929 = vmatprep.subr.mxu0 0.0
    %930 = vmatpush1.xpose.msra.mxu0 %v893
    %931 = vmatprep.subr.mxu0 0.0
    %932 = vmatpush1.xpose.msra.mxu0 %v890
    %933 = vmatprep.subr.mxu0 0.0
    %934 = vmatpush2.xpose.msra.mxu0 0.0
    %935 = vmatprep.subr.mxu0 0.0
    %936 = vmatpush2.xpose.msra.mxu0 0.0
    %937 = vmatprep.subr.mxu0 0.0
    %938 = vmatpush2.xpose.msra.mxu0 0.0
    %939 = vmatprep.subr.mxu0 0.0
    %940 = vmatpush2.xpose.msra.mxu0 0.0
    %941 = vmatprep.subr.mxu0 0.0
    %942 = vmatpush2.xpose.msra.mxu0 0.0
    %943 = vmatprep.subr.mxu0 0.0
    %944 = vmatpush2.xpose.msra.mxu0 0.0
    %945 = vmatprep.subr.mxu0 0.0
    %946 = vmatpush2.xpose.msra.mxu0 0.0
    %947 = vmatprep.subr.mxu0 0.0
    %948 = vmatpush2.xpose.msra.mxu0 0.0
    %949 = vmatprep.subr.mxu0 0.0
    %950 = vmatpush2.xpose.msra.mxu0 0.0
    %951 = vmatprep.subr.mxu0 0.0
    %952 = vmatpush2.xpose.msra.mxu0 0.0
    %953 = vmatprep.subr.mxu0 0.0
    %954 = vmatpush2.xpose.msra.mxu0 0.0
    %955 = vmatprep.subr.mxu0 0.0
    %956 = vmatpush2.xpose.msra.mxu0 0.0
    %957 = vmatprep.subr.mxu0 0.0
    %958 = vmatpush2.xpose.msra.mxu0 0.0
    %959 = vmatprep.subr.mxu0 0.0
    %960 = vmatpush2.xpose.msra.mxu0 0.0
    %961 = vmatprep.subr.mxu0 0.0
    %962 = vmatpush2.xpose.msra.mxu0 0.0
    %963 = vmatprep.subr.mxu0 0.0
    %964 = vmatpush2.xpose.msra.mxu0 0.0
    %965 = vmatprep.mubr.f32.mxu0 0.0
    %966 = vmatmul.mubr.f32.gmra.mxu0 %v887
    %v967 = vpop.f32.mrf.mxu0
    %v968 = vadd.f32 %v884, %v967
    %v969 = vpop.f32.mrf.mxu0
    %970 = vdwg.mxu0
    %971 = vst.msk [vmem:[#allocation3] sm:$0x3] %vm877, %v968
    // Predicated region
    $region42: #{stare_encoder_forward.1} parent=1 // pred_check
      _
    $region43: #{stare_encoder_forward.1} parent=1 // pred_check_branch
      %973 = sbr.rel (0) target = $region45
    $region44: #{stare_encoder_forward.1} parent=1 // pred_region
      %s975 = ssub.s32 32, 32
      %976 = vsyncadd [#allocation4], %s975
      %s978 = sshll.u32 [#allocation3], 4
      %s979 = int_to_ptr.vmem [resolvable:$true] %s978
      %981 = dma.vmem_to_hbm [thread:$0]  %s979, 32, %s10, [#allocation4]
    $region45: #{stare_encoder_forward.1} parent=1 // pred_fallthru
      _
    // Predicated region
    $region46: #{stare_encoder_forward.1} parent=1 // pred_check
      _
    $region47: #{stare_encoder_forward.1} parent=1 // pred_check_branch
      %983 = sbr.rel (0) target = $region49
    $region48: #{stare_encoder_forward.1} parent=1 // pred_region
      %s985 = ssub.s32 32, 32
      %986 = vsyncadd [#allocation6], %s985
      %s988 = sshll.u32 [#allocation5], 4
      %s989 = int_to_ptr.vmem [resolvable:$true] %s988
      %991 = dma.vmem_to_hbm [thread:$0]  %s989, 32, %s11, [#allocation6]
    $region49: #{stare_encoder_forward.1} parent=1 // pred_fallthru
      _
    // Predicated region
    $region50: #{stare_encoder_forward.1} parent=1 // pred_check
      _
    $region51: #{stare_encoder_forward.1} parent=1 // pred_check_branch
      %993 = sbr.rel (0) target = $region53
    $region52: #{stare_encoder_forward.1} parent=1 // pred_region
      %994 = dma.done [#allocation4], 32
    $region53: #{stare_encoder_forward.1} parent=1 // pred_fallthru
      _
    // Predicated region
    $region54: #{stare_encoder_forward.1} parent=1 // pred_check
      _
    $region55: #{stare_encoder_forward.1} parent=1 // pred_check_branch
      %996 = sbr.rel (0) target = $region57
    $region56: #{stare_encoder_forward.1} parent=1 // pred_region
      %997 = dma.done [#allocation6], 32
    $region57: #{stare_encoder_forward.1} parent=1 // pred_fallthru
      _
    %998 = vsyncpa [#allocation4], 1
    %999 = vsyncpa [#allocation6], 1

</llo_original>
